<compile_context>
chip_gen: v5e
topology: v5e:2x2
jax: 0.10.0
libtpu: 0.0.40
codegen_flags: <defaults>
</compile_context>

<pallas_src>
import functools

import jax
import jax.numpy as jnp
from jax.experimental import pallas as pl
from jax.experimental.pallas import tpu as pltpu

_HIGHEST = jax.lax.Precision.HIGHEST


def _pam_kernel(x_q_ref, x_k_ref, mt_ref, u_ref, wv_ref, bv_ref, gamma_ref,
                out_ref, aq_ref, m_ref, l_ref, acc_ref,
                *, n_valid, n_padded, approx_recip):
    ki = pl.program_id(2)
    nk = pl.num_programs(2)
    cdt = mt_ref.dtype                       # MXU compute dtype (bf16 or f32)

    # ---- per query-tile init (a new (b, qi) slice starts at ki == 0) --------
    @pl.when(ki == 0)
    def _init():
        m_ref[...] = jnp.full(m_ref.shape, -jnp.inf, dtype=m_ref.dtype)
        l_ref[...] = jnp.zeros(l_ref.shape, dtype=l_ref.dtype)
        acc_ref[...] = jnp.zeros(acc_ref.shape, dtype=acc_ref.dtype)
        # Folded query projection, cached for the whole key sweep:
        #   aq[:, i] = (Wk^T Wq) x_i + Wk^T bq                    -> (C, Tq)
        xq = x_q_ref[0].astype(cdt)
        aq = jax.lax.dot_general(mt_ref[...], xq, (((1,), (0,)), ((), ())),
                                 preferred_element_type=jnp.float32)
        aq_ref[...] = (aq + u_ref[...]).astype(aq_ref.dtype)

    xk = x_k_ref[0].astype(cdt)                                    # (C, Tk)

    # Transposed energy tile: e_t[j, i] = (Wk x_j)·(Wq x_i + bq) == energy[i, j]
    # (transposed operand handled via dot_general dimension numbers, no .T).
    e_t = jax.lax.dot_general(xk, aq_ref[...], (((0,), (0,)), ((), ())),
                              preferred_element_type=jnp.float32)  # (Tk, Tq)

    if n_padded != n_valid:  # static branch: mask padded key positions
        tk_blk = e_t.shape[0]
        row_id = ki * tk_blk + jax.lax.broadcasted_iota(jnp.int32, e_t.shape, 0)
        e_t = jnp.where(row_id < n_valid, e_t, -1e30)

    # ---- online softmax over the key (sublane) axis --------------------------
    m_prev = m_ref[...]                                            # (1, Tq)
    m_new = jnp.maximum(m_prev, jnp.max(e_t, axis=0, keepdims=True))
    alpha = jnp.exp(m_prev - m_new)                                # (1, Tq)
    p = jnp.exp(e_t - m_new)                                       # (Tk, Tq)
    l_ref[...] = alpha * l_ref[...] + jnp.sum(p, axis=0, keepdims=True)
    # Accumulate attention-weighted *raw* x columns; the value conv is applied
    # once per q-tile in the epilogue (softmax rows sum to 1, so bv folds out).
    acc_ref[...] = alpha * acc_ref[...] + jax.lax.dot_general(
        xk, p.astype(cdt), (((1,), (0,)), ((), ())),
        preferred_element_type=jnp.float32)                        # (C, Tq)
    m_ref[...] = m_new

    # ---- finalize: normalize, value conv, residual, lane-dense (C, Tq) store --
    @pl.when(ki == nk - 1)
    def _done():
        inv_l = pl.reciprocal(l_ref[...], approx=approx_recip)     # (1, Tq)
        ctx = acc_ref[...] * inv_l                                 # (C, Tq) f32
        y = jax.lax.dot_general(wv_ref[...], ctx, (((1,), (0,)), ((), ())),
                                preferred_element_type=jnp.float32) + bv_ref[...]
        out_ref[0] = (gamma_ref[0, 0] * y + x_q_ref[0]).astype(out_ref.dtype)


def _pick_tile(n_padded, cap):
    t = max(128, min(cap, n_padded))
    t -= t % 128
    while n_padded % t:
        t -= 128
    return t


def pam_forward(x_nchw, wq, bq, wk, bk, wv, bv, gamma, *,
                compute_dtype=jnp.bfloat16, tq=None, tk=None,
                vmem_limit_bytes=48 * 1024 * 1024):
    """PAM_Module forward. x: (B, C, H, W); 1x1 conv weights as (out, in)."""
    B, C, H, W = x_nchw.shape
    N = H * W
    n_pad = ((N + 127) // 128) * 128
    # Default tile caps keep the working set comfortable on the smallest VMEM
    # generation (v7x: 64 MiB) at typical DANet channel counts; override for
    # very large C or to push arithmetic intensity higher on v5e/v6e.
    if tq is None:
        tq = _pick_tile(n_pad, 512)
    if tk is None:
        tk = _pick_tile(n_pad, 512)
    assert n_pad % tq == 0 and n_pad % tk == 0

    f32 = jnp.float32
    x_bcn = x_nchw.astype(f32).reshape(B, C, N)
    if n_pad != N:
        x_bcn = jnp.pad(x_bcn, ((0, 0), (0, 0), (0, n_pad - N)))
    # Key-side stream (the only O(N^2)-reuse DMA stream) in compute dtype.
    x_key = x_bcn if compute_dtype == f32 else x_bcn.astype(compute_dtype)

    # Fold query/key convs: Mt = Wk^T Wq (C, C), u = Wk^T bq (C, 1).
    mt = jnp.einsum('oc,od->cd', wk.astype(f32), wq.astype(f32),
                    precision=_HIGHEST).astype(compute_dtype)
    u = jnp.einsum('oc,o->c', wk.astype(f32), bq.astype(f32),
                   precision=_HIGHEST).reshape(C, 1)
    wv32 = wv.astype(f32)                 # used once per q-tile, keep full f32
    bv2 = bv.astype(f32).reshape(C, 1)
    gamma2 = gamma.astype(f32).reshape(1, 1)

    n_q = n_pad // tq
    n_k = n_pad // tk

    kernel = functools.partial(
        _pam_kernel, n_valid=N, n_padded=n_pad,
        approx_recip=(compute_dtype == jnp.bfloat16))

    grid_spec = pltpu.PrefetchScalarGridSpec(
        num_scalar_prefetch=0,
        grid=(B, n_q, n_k),
        in_specs=[
            pl.BlockSpec((1, C, tq), lambda b, qi, ki: (b, 0, qi)),  # x (query view, f32)
            pl.BlockSpec((1, C, tk), lambda b, qi, ki: (b, 0, ki)),  # x (key view, compute dtype)
            pl.BlockSpec((C, C), lambda b, qi, ki: (0, 0)),          # Mt = Wk^T Wq
            pl.BlockSpec((C, 1), lambda b, qi, ki: (0, 0)),          # u  = Wk^T bq
            pl.BlockSpec((C, C), lambda b, qi, ki: (0, 0)),          # Wv (f32)
            pl.BlockSpec((C, 1), lambda b, qi, ki: (0, 0)),          # bv
            pl.BlockSpec(memory_space=pltpu.MemorySpace.SMEM),       # gamma scalar
        ],
        out_specs=pl.BlockSpec((1, C, tq), lambda b, qi, ki: (b, 0, qi)),
        scratch_shapes=[
            pltpu.VMEM((C, tq), compute_dtype),   # cached folded query projection
            pltpu.VMEM((1, tq), f32),             # running max
            pltpu.VMEM((1, tq), f32),             # running sum
            pltpu.VMEM((C, tq), f32),             # output accumulator
        ],
    )

    out_bcn = pl.pallas_call(
        kernel,
        out_shape=jax.ShapeDtypeStruct((B, C, n_pad), f32),
        grid_spec=grid_spec,
        compiler_params=pltpu.CompilerParams(
            dimension_semantics=("parallel", "parallel", "arbitrary"),
            vmem_limit_bytes=vmem_limit_bytes),
    )(x_bcn, x_key, mt, u, wv32, bv2, gamma2)

    return out_bcn[:, :, :N].reshape(B, C, H, W)


def pam_reference(x_nchw, wq, bq, wk, bk, wv, bv, gamma):
    """Pure-JAX f32 reference mirroring the PyTorch forward exactly."""
    B, C, H, W = x_nchw.shape
    N = H * W
    x = x_nchw.reshape(B, C, N)
    q = jnp.einsum('oc,bcn->bon', wq, x, precision=_HIGHEST) + bq[None, :, None]
    k = jnp.einsum('oc,bcn->bon', wk, x, precision=_HIGHEST) + bk[None, :, None]
    v = jnp.einsum('oc,bcn->bon', wv, x, precision=_HIGHEST) + bv[None, :, None]
    energy = jnp.einsum('bci,bcj->bij', q, k, precision=_HIGHEST)
    att = jax.nn.softmax(energy, axis=-1)
    out = jnp.einsum('bcj,bij->bci', v, att, precision=_HIGHEST)
    out = gamma * out + x
    return out.reshape(B, C, H, W)


if __name__ == "__main__":
    k1, k2 = jax.random.split(jax.random.PRNGKey(0))

    def make_inputs(B, C, H, W, key):
        C8 = max(C // 8, 1)
        ks = jax.random.split(key, 7)
        x = jax.random.normal(ks[0], (B, C, H, W), jnp.float32)
        wq = jax.random.normal(ks[1], (C8, C), jnp.float32) * 0.1
        bq = jax.random.normal(ks[2], (C8,), jnp.float32) * 0.1
        wk = jax.random.normal(ks[3], (C8, C), jnp.float32) * 0.1
        bk = jax.random.normal(ks[4], (C8,), jnp.float32) * 0.1
        wv = jax.random.normal(ks[5], (C, C), jnp.float32) * 0.1
        bv = jax.random.normal(ks[6], (C,), jnp.float32) * 0.1
        # Module init is gamma = 0 (output == x); use a nonzero value so the
        # attention path is actually exercised / verified.
        gamma = jnp.array([0.5], jnp.float32)
        return (x, wq, bq, wk, bk, wv, bv, gamma)

    # Case 1: B=2, C=16, H=W=16 -> N=256, Tq=Tk=128 -> grid (2, 2, 2):
    # exercises multi-tile online-softmax accumulation.
    args1 = make_inputs(2, 16, 16, 16, k1)
    ref1 = pam_reference(*args1)

    out_f32 = pam_forward(*args1, compute_dtype=jnp.float32, tq=128, tk=128)
    jax.block_until_ready(out_f32)
    assert out_f32.shape == ref1.shape
    assert jnp.allclose(out_f32, ref1, atol=1e-4, rtol=1e-4), (
        "f32 kernel mismatch, max abs err %g"
        % float(jnp.max(jnp.abs(out_f32 - ref1))))

    out_bf16 = pam_forward(*args1, compute_dtype=jnp.bfloat16, tq=128, tk=128)
    jax.block_until_ready(out_bf16)
    assert jnp.allclose(out_bf16, ref1, atol=5e-2, rtol=5e-2), (
        "bf16 kernel mismatch, max abs err %g"
        % float(jnp.max(jnp.abs(out_bf16 - ref1))))

    # Case 3: single-tile key sweep with default tile picker (256-wide tiles).
    out_big = pam_forward(*args1, compute_dtype=jnp.float32)
    jax.block_until_ready(out_big)
    assert jnp.allclose(out_big, ref1, atol=1e-4, rtol=1e-4), (
        "default-tile kernel mismatch, max abs err %g"
        % float(jnp.max(jnp.abs(out_big - ref1))))

    # Case 2: H=W=10 -> N=100 padded to 128: exercises the masked-tail path.
    args2 = make_inputs(2, 16, 10, 10, k2)
    ref2 = pam_reference(*args2)
    out2 = pam_forward(*args2, compute_dtype=jnp.float32)
    jax.block_until_ready(out2)
    assert jnp.allclose(out2, ref2, atol=1e-4, rtol=1e-4), (
        "padded-N kernel mismatch, max abs err %g"
        % float(jnp.max(jnp.abs(out2 - ref2))))

    print("KERNEL_OK")
</pallas_src>

<mosaic_0001>
module attributes {stable_mosaic.version = 11 : i64} {
  func.func @_pam_kernel(%arg0: i32, %arg1: i32, %arg2: i32, %arg3: memref<1x16x128xf32, #tpu.memory_space<vmem>>, %arg4: memref<1x16x128xf32, #tpu.memory_space<vmem>>, %arg5: memref<16x16xf32, #tpu.memory_space<vmem>>, %arg6: memref<16x1xf32, #tpu.memory_space<vmem>>, %arg7: memref<16x16xf32, #tpu.memory_space<vmem>>, %arg8: memref<16x1xf32, #tpu.memory_space<vmem>>, %arg9: memref<1x1xf32, #tpu.memory_space<smem>>, %arg10: memref<1x16x128xf32, #tpu.memory_space<vmem>>, %arg11: memref<16x128xf32, #tpu.memory_space<vmem>>, %arg12: memref<1x128xf32, #tpu.memory_space<vmem>>, %arg13: memref<1x128xf32, #tpu.memory_space<vmem>>, %arg14: memref<16x128xf32, #tpu.memory_space<vmem>>) attributes {dimension_semantics = [#tpu.dimension_semantics<parallel>, #tpu.dimension_semantics<parallel>, #tpu.dimension_semantics<arbitrary>], iteration_bounds = array<i64: 2, 2, 2>, scalar_prefetch = 0 : i64, scratch_operands = 4 : i64, tpu.core_type = #tpu.core_type<tc>, window_params = [{transform_indices = @transform_0, window_bounds = array<i64: 1, 16, 128>}, {transform_indices = @transform_1, window_bounds = array<i64: 1, 16, 128>}, {pipeline_mode = #tpu.pipeline_mode<synchronous>, transform_indices = @transform_2, window_bounds = array<i64: 16, 16>}, {pipeline_mode = #tpu.pipeline_mode<synchronous>, transform_indices = @transform_3, window_bounds = array<i64: 16, 1>}, {pipeline_mode = #tpu.pipeline_mode<synchronous>, transform_indices = @transform_4, window_bounds = array<i64: 16, 16>}, {pipeline_mode = #tpu.pipeline_mode<synchronous>, transform_indices = @transform_5, window_bounds = array<i64: 16, 1>}, {transform_indices = @transform_6, window_bounds = array<i64: 1, 1>}, {transform_indices = @transform_7, window_bounds = array<i64: 1, 16, 128>}]} {
    %c0_i32 = arith.constant 0 : i32
    %0 = arith.cmpi eq, %arg2, %c0_i32 : i32
    %1 = arith.extui %0 : i1 to i32
    %c0_i32_0 = arith.constant 0 : i32
    %2 = arith.cmpi ne, %1, %c0_i32_0 : i32
    scf.if %2 {
      %cst_21 = arith.constant 0xFF800000 : f32
      %32 = vector.broadcast %cst_21 : f32 to vector<1x128xf32>
      %c0_22 = arith.constant 0 : index
      %c0_23 = arith.constant 0 : index
      %33 = vector.load %arg12[%c0_22, %c0_23] : memref<1x128xf32, #tpu.memory_space<vmem>>, vector<1x128xf32>
      tpu.vector_store %arg12[%c0_22, %c0_23], %32 {strides = array<i32>} : memref<1x128xf32, #tpu.memory_space<vmem>>, vector<1x128xf32>,
      %cst_24 = arith.constant 0.000000e+00 : f32
      %34 = vector.broadcast %cst_24 : f32 to vector<1x128xf32>
      %c0_25 = arith.constant 0 : index
      %c0_26 = arith.constant 0 : index
      %35 = vector.load %arg13[%c0_25, %c0_26] : memref<1x128xf32, #tpu.memory_space<vmem>>, vector<1x128xf32>
      tpu.vector_store %arg13[%c0_25, %c0_26], %34 {strides = array<i32>} : memref<1x128xf32, #tpu.memory_space<vmem>>, vector<1x128xf32>,
      %cst_27 = arith.constant 0.000000e+00 : f32
      %36 = vector.broadcast %cst_27 : f32 to vector<16x128xf32>
      %c0_28 = arith.constant 0 : index
      %c0_29 = arith.constant 0 : index
      %37 = vector.load %arg14[%c0_28, %c0_29] : memref<16x128xf32, #tpu.memory_space<vmem>>, vector<16x128xf32>
      tpu.vector_store %arg14[%c0_28, %c0_29], %36 {strides = array<i32>} : memref<16x128xf32, #tpu.memory_space<vmem>>, vector<16x128xf32>,
      %c0_30 = arith.constant 0 : index
      %c0_31 = arith.constant 0 : index
      %c0_32 = arith.constant 0 : index
      %38 = vector.load %arg3[%c0_30, %c0_31, %c0_32] : memref<1x16x128xf32, #tpu.memory_space<vmem>>, vector<1x16x128xf32>
      %39 = vector.shape_cast %38 : vector<1x16x128xf32> to vector<16x128xf32>
      %c0_33 = arith.constant 0 : index
      %c0_34 = arith.constant 0 : index
      %40 = vector.load %arg5[%c0_33, %c0_34] : memref<16x16xf32, #tpu.memory_space<vmem>>, vector<16x16xf32>
      %cst_35 = arith.constant dense<0.000000e+00> : vector<16x128xf32>
      %41 = tpu.matmul %40, %39, %cst_35 {dimension_numbers = #tpu.dot_dimension_numbers<[1], [0], [0], [1], [0, 0, 1, 1], [], []>} : vector<16x16xf32>, vector<16x128xf32>, vector<16x128xf32> -> vector<16x128xf32>
      %c0_36 = arith.constant 0 : index
      %c0_37 = arith.constant 0 : index
      %42 = vector.load %arg6[%c0_36, %c0_37] : memref<16x1xf32, #tpu.memory_space<vmem>>, vector<16x1xf32>
      %43 = vector.broadcast %42 : vector<16x1xf32> to vector<16x128xf32>
      %44 = arith.addf %41, %43 : vector<16x128xf32>
      %c0_38 = arith.constant 0 : index
      %c0_39 = arith.constant 0 : index
      %45 = vector.load %arg11[%c0_38, %c0_39] : memref<16x128xf32, #tpu.memory_space<vmem>>, vector<16x128xf32>
      tpu.vector_store %arg11[%c0_38, %c0_39], %44 {strides = array<i32>} : memref<16x128xf32, #tpu.memory_space<vmem>>, vector<16x128xf32>,
    } else {
    }
    %c0 = arith.constant 0 : index
    %c0_1 = arith.constant 0 : index
    %c0_2 = arith.constant 0 : index
    %3 = vector.load %arg4[%c0, %c0_1, %c0_2] : memref<1x16x128xf32, #tpu.memory_space<vmem>>, vector<1x16x128xf32>
    %4 = vector.shape_cast %3 : vector<1x16x128xf32> to vector<16x128xf32>
    %c0_3 = arith.constant 0 : index
    %c0_4 = arith.constant 0 : index
    %5 = vector.load %arg11[%c0_3, %c0_4] : memref<16x128xf32, #tpu.memory_space<vmem>>, vector<16x128xf32>
    %cst = arith.constant dense<0.000000e+00> : vector<128x128xf32>
    %6 = tpu.matmul %4, %5, %cst {dimension_numbers = #tpu.dot_dimension_numbers<[0], [0], [1], [1], [0, 1, 1, 1], [], []>} : vector<16x128xf32>, vector<16x128xf32>, vector<128x128xf32> -> vector<128x128xf32>
    %c0_5 = arith.constant 0 : index
    %c0_6 = arith.constant 0 : index
    %7 = vector.load %arg12[%c0_5, %c0_6] : memref<1x128xf32, #tpu.memory_space<vmem>>, vector<1x128xf32>
    %cst_7 = arith.constant dense<0xFF800000> : vector<128xf32>
    %8 = vector.multi_reduction <maximumf>, %6, %cst_7 [0] : vector<128x128xf32> to vector<128xf32>
    %9 = vector.shape_cast %8 : vector<128xf32> to vector<1x128xf32>
    %10 = arith.maximumf %7, %9 : vector<1x128xf32>
    %11 = arith.subf %7, %10 : vector<1x128xf32>
    %12 = math.exp %11 : vector<1x128xf32>
    %13 = vector.broadcast %10 : vector<1x128xf32> to vector<128x128xf32>
    %14 = arith.subf %6, %13 : vector<128x128xf32>
    %15 = math.exp %14 : vector<128x128xf32>
    %c0_8 = arith.constant 0 : index
    %c0_9 = arith.constant 0 : index
    %16 = vector.load %arg13[%c0_8, %c0_9] : memref<1x128xf32, #tpu.memory_space<vmem>>, vector<1x128xf32>
    %17 = arith.mulf %12, %16 : vector<1x128xf32>
    %cst_10 = arith.constant dense<0.000000e+00> : vector<128xf32>
    %18 = vector.multi_reduction <add>, %15, %cst_10 [0] : vector<128x128xf32> to vector<128xf32>
    %19 = vector.shape_cast %18 : vector<128xf32> to vector<1x128xf32>
    %20 = arith.addf %17, %19 : vector<1x128xf32>
    %c0_11 = arith.constant 0 : index
    %c0_12 = arith.constant 0 : index
    %21 = vector.load %arg13[%c0_11, %c0_12] : memref<1x128xf32, #tpu.memory_space<vmem>>, vector<1x128xf32>
    tpu.vector_store %arg13[%c0_11, %c0_12], %20 {strides = array<i32>} : memref<1x128xf32, #tpu.memory_space<vmem>>, vector<1x128xf32>,
    %c0_13 = arith.constant 0 : index
    %c0_14 = arith.constant 0 : index
    %22 = vector.load %arg14[%c0_13, %c0_14] : memref<16x128xf32, #tpu.memory_space<vmem>>, vector<16x128xf32>
    %23 = vector.broadcast %12 : vector<1x128xf32> to vector<16x128xf32>
    %24 = arith.mulf %23, %22 : vector<16x128xf32>
    %cst_15 = arith.constant dense<0.000000e+00> : vector<16x128xf32>
    %25 = tpu.matmul %4, %15, %cst_15 {dimension_numbers = #tpu.dot_dimension_numbers<[1], [0], [0], [1], [0, 0, 1, 1], [], []>} : vector<16x128xf32>, vector<128x128xf32>, vector<16x128xf32> -> vector<16x128xf32>
    %26 = arith.addf %24, %25 : vector<16x128xf32>
    %c0_16 = arith.constant 0 : index
    %c0_17 = arith.constant 0 : index
    %27 = vector.load %arg14[%c0_16, %c0_17] : memref<16x128xf32, #tpu.memory_space<vmem>>, vector<16x128xf32>
    tpu.vector_store %arg14[%c0_16, %c0_17], %26 {strides = array<i32>} : memref<16x128xf32, #tpu.memory_space<vmem>>, vector<16x128xf32>,
    %c0_18 = arith.constant 0 : index
    %c0_19 = arith.constant 0 : index
    %28 = vector.load %arg12[%c0_18, %c0_19] : memref<1x128xf32, #tpu.memory_space<vmem>>, vector<1x128xf32>
    tpu.vector_store %arg12[%c0_18, %c0_19], %10 {strides = array<i32>} : memref<1x128xf32, #tpu.memory_space<vmem>>, vector<1x128xf32>,
    %c1_i32 = arith.constant 1 : i32
    %29 = arith.cmpi eq, %arg2, %c1_i32 : i32
    %30 = arith.extui %29 : i1 to i32
    %c0_i32_20 = arith.constant 0 : i32
    %31 = arith.cmpi ne, %30, %c0_i32_20 : i32
    scf.if %31 {
      %c0_21 = arith.constant 0 : index
      %c0_22 = arith.constant 0 : index
      %32 = vector.load %arg13[%c0_21, %c0_22] : memref<1x128xf32, #tpu.memory_space<vmem>>, vector<1x128xf32>
      %33 = tpu.reciprocal %32 : vector<1x128xf32> -> vector<1x128xf32>
      %c0_23 = arith.constant 0 : index
      %c0_24 = arith.constant 0 : index
      %34 = vector.load %arg14[%c0_23, %c0_24] : memref<16x128xf32, #tpu.memory_space<vmem>>, vector<16x128xf32>
      %35 = vector.broadcast %33 : vector<1x128xf32> to vector<16x128xf32>
      %36 = arith.mulf %34, %35 : vector<16x128xf32>
      %c0_25 = arith.constant 0 : index
      %c0_26 = arith.constant 0 : index
      %37 = vector.load %arg7[%c0_25, %c0_26] : memref<16x16xf32, #tpu.memory_space<vmem>>, vector<16x16xf32>
      %cst_27 = arith.constant dense<0.000000e+00> : vector<16x128xf32>
      %38 = tpu.matmul %37, %36, %cst_27 {dimension_numbers = #tpu.dot_dimension_numbers<[1], [0], [0], [1], [0, 0, 1, 1], [], []>} : vector<16x16xf32>, vector<16x128xf32>, vector<16x128xf32> -> vector<16x128xf32>
      %c0_28 = arith.constant 0 : index
      %c0_29 = arith.constant 0 : index
      %39 = vector.load %arg8[%c0_28, %c0_29] : memref<16x1xf32, #tpu.memory_space<vmem>>, vector<16x1xf32>
      %40 = vector.broadcast %39 : vector<16x1xf32> to vector<16x128xf32>
      %41 = arith.addf %38, %40 : vector<16x128xf32>
      %c0_30 = arith.constant 0 : index
      %c0_31 = arith.constant 0 : index
      %42 = memref.load %arg9[%c0_30, %c0_31] : memref<1x1xf32, #tpu.memory_space<smem>>
      %43 = vector.broadcast %42 : f32 to vector<16x128xf32>
      %44 = arith.mulf %43, %41 : vector<16x128xf32>
      %c0_32 = arith.constant 0 : index
      %c0_33 = arith.constant 0 : index
      %c0_34 = arith.constant 0 : index
      %45 = vector.load %arg3[%c0_32, %c0_33, %c0_34] : memref<1x16x128xf32, #tpu.memory_space<vmem>>, vector<1x16x128xf32>
      %46 = vector.shape_cast %45 : vector<1x16x128xf32> to vector<16x128xf32>
      %47 = arith.addf %44, %46 : vector<16x128xf32>
      %c0_35 = arith.constant 0 : index
      %c0_36 = arith.constant 0 : index
      %c0_37 = arith.constant 0 : index
      %48 = vector.load %arg10[%c0_35, %c0_36, %c0_37] : memref<1x16x128xf32, #tpu.memory_space<vmem>>, vector<1x16x128xf32>
      %49 = vector.shape_cast %48 : vector<1x16x128xf32> to vector<16x128xf32>
      %50 = vector.shape_cast %47 : vector<16x128xf32> to vector<1x16x128xf32>
      tpu.vector_store %arg10[%c0_35, %c0_36, %c0_37], %50 {strides = array<i32>} : memref<1x16x128xf32, #tpu.memory_space<vmem>>, vector<1x16x128xf32>,
    } else {
    }
    return
  }
  func.func @transform_0(%arg0: i32, %arg1: i32, %arg2: i32) -> (i32, i32, i32) {
    %c0_i32 = arith.constant 0 : i32
    %c0_i32_0 = arith.constant 0 : i32
    return %arg0, %c0_i32, %arg1 : i32, i32, i32
  }
  func.func @transform_1(%arg0: i32, %arg1: i32, %arg2: i32) -> (i32, i32, i32) {
    %c0_i32 = arith.constant 0 : i32
    %c0_i32_0 = arith.constant 0 : i32
    return %arg0, %c0_i32, %arg2 : i32, i32, i32
  }
  func.func @transform_2(%arg0: i32, %arg1: i32, %arg2: i32) -> (i32, i32) {
    %c0_i32 = arith.constant 0 : i32
    %c0_i32_0 = arith.constant 0 : i32
    %c0_i32_1 = arith.constant 0 : i32
    return %c0_i32, %c0_i32_0 : i32, i32
  }
  func.func @transform_3(%arg0: i32, %arg1: i32, %arg2: i32) -> (i32, i32) {
    %c0_i32 = arith.constant 0 : i32
    %c0_i32_0 = arith.constant 0 : i32
    %c0_i32_1 = arith.constant 0 : i32
    return %c0_i32, %c0_i32_0 : i32, i32
  }
  func.func @transform_4(%arg0: i32, %arg1: i32, %arg2: i32) -> (i32, i32) {
    %c0_i32 = arith.constant 0 : i32
    %c0_i32_0 = arith.constant 0 : i32
    %c0_i32_1 = arith.constant 0 : i32
    return %c0_i32, %c0_i32_0 : i32, i32
  }
  func.func @transform_5(%arg0: i32, %arg1: i32, %arg2: i32) -> (i32, i32) {
    %c0_i32 = arith.constant 0 : i32
    %c0_i32_0 = arith.constant 0 : i32
    %c0_i32_1 = arith.constant 0 : i32
    return %c0_i32, %c0_i32_0 : i32, i32
  }
  func.func @transform_6(%arg0: i32, %arg1: i32, %arg2: i32) -> (i32, i32) {
    %c0_i32 = arith.constant 0 : i32
    %c0_i32_0 = arith.constant 0 : i32
    %c0_i32_1 = arith.constant 0 : i32
    return %c0_i32, %c0_i32_0 : i32, i32
  }
  func.func @transform_7(%arg0: i32, %arg1: i32, %arg2: i32) -> (i32, i32, i32) {
    %c0_i32 = arith.constant 0 : i32
    %c0_i32_0 = arith.constant 0 : i32
    return %arg0, %c0_i32, %arg1 : i32, i32, i32
  }
}

</mosaic_0001>

<llo_original>
// kernel: tpu_custom_call.1
$region0: #{tpu_custom_call.1}
  #allocation0 [shape = 'u32[]', space=smem, size = 0x4, offset = 0x4, fixed_abs, tag = 'smem constant byte address 0x4 - core index']
  #allocation1 [shape = 'u32[72,128]{1,0:T(1,128)}', space=vmem, size = 0x9000, scoped, tag = 'internal scratch']
  #allocation2 [shape = 'f32[16,128]{1,0:T(8,128)}', space=vmem, size = 0x2000, scoped, tag = 'scratch operand']
  #allocation3 [shape = 'f32[1,128]{1,0:T(1,128)}', space=vmem, size = 0x200, scoped, tag = 'scratch operand']
  #allocation4 [shape = 'f32[1,128]{1,0:T(1,128)}', space=vmem, size = 0x200, scoped, tag = 'scratch operand']
  #allocation5 [shape = 'f32[16,128]{1,0:T(8,128)}', space=vmem, size = 0x2000, scoped, tag = 'scratch operand']
  #allocation6 [shape = 'f32[1,1]{1,0:T(1,128)S(6)}', space=smem, size = 0x200, scoped, tag = 'scoped memory for tpu_custom_call.1']
  %s0 = inlined_call_operand.hbm [shape: f32[2,16,256], index: 0, kind: input, shape index: {}]
  %s1 = inlined_call_operand.hbm [shape: f32[2,16,256], index: 1, kind: input, shape index: {}]
  %s2 = inlined_call_operand.vmem [shape: f32[16,16], index: 2, kind: input, shape index: {}]
  %s3 = inlined_call_operand.vmem [shape: f32[16,1], index: 3, kind: input, shape index: {}]
  %s4 = inlined_call_operand.vmem [shape: f32[16,16], index: 4, kind: input, shape index: {}]
  %s5 = inlined_call_operand.vmem [shape: f32[16,1], index: 5, kind: input, shape index: {}]
  %s6 = inlined_call_operand.<no memory space> [shape: f32[1,1], index: 6, kind: input, shape index: {}]
  %s7 = inlined_call_operand.hbm [shape: f32[2,16,256], index: 7, kind: output, shape index: {}]
  %s8 = sld [smem:[#allocation0]]
  $region77: #{tpu_custom_call.1} parent=0
    _
  %s10 = ssub.s32 1, %s8
  %s11 = scalar_select 0, %s10, %s8
  %12 = sst [smem:[#allocation6]] %s6
  $region1: #{tpu_custom_call.1} parent=0
    #allocation7 [shape = 'u8[16384]{0}', space=vmem, size = 0x4000, scoped, tag = 'input window, operand 0']
    #allocation8 [shape = 's32[2]{0}', space=sflag, size = 0x8, scoped, tag = 'scoped memory for tpu_custom_call.1']
    #allocation9 [shape = 's32[2]{0}', space=sflag, size = 0x8, scoped, tag = 'scoped memory for tpu_custom_call.1']
    #allocation10 [shape = 'u8[16384]{0}', space=vmem, size = 0x4000, scoped, tag = 'input window, operand 1']
    #allocation11 [shape = 's32[2]{0}', space=sflag, size = 0x8, scoped, tag = 'scoped memory for tpu_custom_call.1']
    #allocation12 [shape = 'u8[16384]{0}', space=vmem, size = 0x4000, scoped, tag = 'output window, operand 0']
    %13 = vsyncpa [#allocation8], 0
    %s14 = scalar_lea.sflag [#allocation8], 1
    %15 = vsyncpa %s14, 0
    %16 = vsyncpa [#allocation11], 0
    %s17 = scalar_lea.sflag [#allocation11], 1
    %18 = vsyncpa %s17, 0
    %19 = vsyncpa [#allocation9], 0
    %s20 = scalar_lea.sflag [#allocation9], 1
    %21 = vsyncpa %s20, 0
    loop: start=0, step=1, limit=10
    $region2: #{tpu_custom_call.1} parent=1 // loop_pre_header
      _
    $region3: #{tpu_custom_call.1} parent=1 // loop_header
      %s23 = sphi 0, %s27
      %p24 = scmp.ge.s32.totalorder %s23, 10
      %s30 = sphi 0, %s49
      %s31 = sphi 0, %s45
      %s32 = sphi 0, %s41
      %s33 = sphi 0, %s30
      %s34 = sphi 0, %s31
      %s35 = sphi 0, %s32
      %s36 = sphi 0, %s33
      %s37 = sphi 0, %s34
      %s38 = sphi 0, %s35
      %s54 = sphi 0, %s56
      %s57 = sphi 0, %s54
      %s58 = sphi 0, %s57
      %s74 = sphi 0, %s58
      %s82 = sphi 0, %s84
      %s85 = sphi 0, %s82
      %s86 = sphi 0, %s85
      %s102 = sphi 0, %s86
      %s106 = sphi 0, %s106
      %s108 = sphi 0, %s106
      %s109 = sphi 0, %s108
      %s123 = sphi 0, %s109
      %s127 = sphi 0, %s127
      %s129 = sphi 0, %s127
      %s130 = sphi 0, %s129
      %s144 = sphi 0, %s130
      %s148 = sphi 0, %s148
      %s150 = sphi 0, %s148
      %s151 = sphi 0, %s150
      %s165 = sphi 0, %s151
      %s169 = sphi 0, %s169
      %s171 = sphi 0, %s169
      %s172 = sphi 0, %s171
      %s186 = sphi 0, %s172
      %s190 = sphi 0, %s190
      %s192 = sphi 0, %s190
      %s193 = sphi 0, %s192
      %s207 = sphi 0, %s193
      %s215 = sphi 0, %s217
      %s218 = sphi 0, %s215
      %s219 = sphi 0, %s218
      %s235 = sphi 0, %s219
    $region4: #{tpu_custom_call.1} parent=1 // loop_header_branch
      %26 = sbr.rel (%p24) target = $region8
    $region5: #{tpu_custom_call.1} parent=1 // loop_body
      %s28 = ssub.s32 %s23, 1
      %s29 = ssub.s32 %s23, 2
      %s39 = sadd.s32 1, %s32
      %p40 = scmp.ge.s32.totalorder %s39, 2
      %s41 = scalar_select %p40, 0, %s39
      %s42 = sadd.s32 1, %s31
      %s43 = scalar_select %p40, %s42, %s31
      %p44 = scmp.ge.s32.totalorder %s43, 2
      %s45 = scalar_select %p44, 0, %s43
      %s46 = sadd.s32 1, %s30
      %s47 = scalar_select %p44, %s46, %s30
      %p48 = scmp.ge.s32.totalorder %s47, 2
      %s49 = scalar_select %p48, 0, %s47
      %s50 = ssub.s32 %s30, %s49
      %s51 = ssub.s32 %s31, %s45
      %s52 = sor.u32 %s50, %s51
      %p53 = scmp.eq.s32.totalorder %s52, 0
      %s55 = sadd.s32 %s54, 1
      %s56 = scalar_select %p53, %s54, %s55
      %p59 = pneg %p53
      %p60 = scmp.eq.s32.totalorder %s23, 7
      %p61 = por %p59, %p60
      %p62 = scmp.ne.s32.totalorder %s54, %s57
      %p63 = scmp.eq.s32.totalorder %s23, 0
      %p64 = por %p62, %p63
      %p65 = scmp.ne.s32.totalorder %s54, %s57
      %p66 = scmp.eq.s32.totalorder %s28, 7
      %p67 = por %p65, %p66
      %p68 = scmp.ne.s32.totalorder %s57, %s58
      %p69 = scmp.eq.s32.totalorder %s28, 0
      %p70 = por %p68, %p69
      %p71 = scmp.ne.s32.totalorder %s57, %s58
      %p72 = scmp.eq.s32.totalorder %s29, 7
      %p73 = por %p71, %p72
      %p75 = scmp.ne.s32.totalorder %s58, %s74
      %p76 = scmp.eq.s32.totalorder %s29, 0
      %p77 = por %p75, %p76
      %s78 = ssub.s32 %s30, %s49
      %s79 = ssub.s32 %s32, %s41
      %s80 = sor.u32 %s78, %s79
      %p81 = scmp.eq.s32.totalorder %s80, 0
      %s83 = sadd.s32 %s82, 1
      %s84 = scalar_select %p81, %s82, %s83
      %p87 = pneg %p81
      %p88 = scmp.eq.s32.totalorder %s23, 7
      %p89 = por %p87, %p88
      %p90 = scmp.ne.s32.totalorder %s82, %s85
      %p91 = scmp.eq.s32.totalorder %s23, 0
      %p92 = por %p90, %p91
      %p93 = scmp.ne.s32.totalorder %s82, %s85
      %p94 = scmp.eq.s32.totalorder %s28, 7
      %p95 = por %p93, %p94
      %p96 = scmp.ne.s32.totalorder %s85, %s86
      %p97 = scmp.eq.s32.totalorder %s28, 0
      %p98 = por %p96, %p97
      %p99 = scmp.ne.s32.totalorder %s85, %s86
      %p100 = scmp.eq.s32.totalorder %s29, 7
      %p101 = por %p99, %p100
      %p103 = scmp.ne.s32.totalorder %s86, %s102
      %p104 = scmp.eq.s32.totalorder %s29, 0
      %p105 = por %p103, %p104
      %s107 = sadd.s32 %s106, 1
      %p110 = scmp.eq.s32.totalorder %s23, 7
      %p111 = scmp.ne.s32.totalorder %s106, %s108
      %p112 = scmp.eq.s32.totalorder %s23, 0
      %p113 = por %p111, %p112
      %p114 = scmp.ne.s32.totalorder %s106, %s108
      %p115 = scmp.eq.s32.totalorder %s28, 7
      %p116 = por %p114, %p115
      %p117 = scmp.ne.s32.totalorder %s108, %s109
      %p118 = scmp.eq.s32.totalorder %s28, 0
      %p119 = por %p117, %p118
      %p120 = scmp.ne.s32.totalorder %s108, %s109
      %p121 = scmp.eq.s32.totalorder %s29, 7
      %p122 = por %p120, %p121
      %p124 = scmp.ne.s32.totalorder %s109, %s123
      %p125 = scmp.eq.s32.totalorder %s29, 0
      %p126 = por %p124, %p125
      %s128 = sadd.s32 %s127, 1
      %p131 = scmp.eq.s32.totalorder %s23, 7
      %p132 = scmp.ne.s32.totalorder %s127, %s129
      %p133 = scmp.eq.s32.totalorder %s23, 0
      %p134 = por %p132, %p133
      %p135 = scmp.ne.s32.totalorder %s127, %s129
      %p136 = scmp.eq.s32.totalorder %s28, 7
      %p137 = por %p135, %p136
      %p138 = scmp.ne.s32.totalorder %s129, %s130
      %p139 = scmp.eq.s32.totalorder %s28, 0
      %p140 = por %p138, %p139
      %p141 = scmp.ne.s32.totalorder %s129, %s130
      %p142 = scmp.eq.s32.totalorder %s29, 7
      %p143 = por %p141, %p142
      %p145 = scmp.ne.s32.totalorder %s130, %s144
      %p146 = scmp.eq.s32.totalorder %s29, 0
      %p147 = por %p145, %p146
      %s149 = sadd.s32 %s148, 1
      %p152 = scmp.eq.s32.totalorder %s23, 7
      %p153 = scmp.ne.s32.totalorder %s148, %s150
      %p154 = scmp.eq.s32.totalorder %s23, 0
      %p155 = por %p153, %p154
      %p156 = scmp.ne.s32.totalorder %s148, %s150
      %p157 = scmp.eq.s32.totalorder %s28, 7
      %p158 = por %p156, %p157
      %p159 = scmp.ne.s32.totalorder %s150, %s151
      %p160 = scmp.eq.s32.totalorder %s28, 0
      %p161 = por %p159, %p160
      %p162 = scmp.ne.s32.totalorder %s150, %s151
      %p163 = scmp.eq.s32.totalorder %s29, 7
      %p164 = por %p162, %p163
      %p166 = scmp.ne.s32.totalorder %s151, %s165
      %p167 = scmp.eq.s32.totalorder %s29, 0
      %p168 = por %p166, %p167
      %s170 = sadd.s32 %s169, 1
      %p173 = scmp.eq.s32.totalorder %s23, 7
      %p174 = scmp.ne.s32.totalorder %s169, %s171
      %p175 = scmp.eq.s32.totalorder %s23, 0
      %p176 = por %p174, %p175
      %p177 = scmp.ne.s32.totalorder %s169, %s171
      %p178 = scmp.eq.s32.totalorder %s28, 7
      %p179 = por %p177, %p178
      %p180 = scmp.ne.s32.totalorder %s171, %s172
      %p181 = scmp.eq.s32.totalorder %s28, 0
      %p182 = por %p180, %p181
      %p183 = scmp.ne.s32.totalorder %s171, %s172
      %p184 = scmp.eq.s32.totalorder %s29, 7
      %p185 = por %p183, %p184
      %p187 = scmp.ne.s32.totalorder %s172, %s186
      %p188 = scmp.eq.s32.totalorder %s29, 0
      %p189 = por %p187, %p188
      %s191 = sadd.s32 %s190, 1
      %p194 = scmp.eq.s32.totalorder %s23, 7
      %p195 = scmp.ne.s32.totalorder %s190, %s192
      %p196 = scmp.eq.s32.totalorder %s23, 0
      %p197 = por %p195, %p196
      %p198 = scmp.ne.s32.totalorder %s190, %s192
      %p199 = scmp.eq.s32.totalorder %s28, 7
      %p200 = por %p198, %p199
      %p201 = scmp.ne.s32.totalorder %s192, %s193
      %p202 = scmp.eq.s32.totalorder %s28, 0
      %p203 = por %p201, %p202
      %p204 = scmp.ne.s32.totalorder %s192, %s193
      %p205 = scmp.eq.s32.totalorder %s29, 7
      %p206 = por %p204, %p205
      %p208 = scmp.ne.s32.totalorder %s193, %s207
      %p209 = scmp.eq.s32.totalorder %s29, 0
      %p210 = por %p208, %p209
      %s211 = ssub.s32 %s30, %s49
      %s212 = ssub.s32 %s31, %s45
      %s213 = sor.u32 %s211, %s212
      %p214 = scmp.eq.s32.totalorder %s213, 0
      %s216 = sadd.s32 %s215, 1
      %s217 = scalar_select %p214, %s215, %s216
      %p220 = pneg %p214
      %p221 = scmp.eq.s32.totalorder %s23, 7
      %p222 = por %p220, %p221
      %p223 = scmp.ne.s32.totalorder %s215, %s218
      %p224 = scmp.eq.s32.totalorder %s23, 0
      %p225 = por %p223, %p224
      %p226 = scmp.ne.s32.totalorder %s215, %s218
      %p227 = scmp.eq.s32.totalorder %s28, 7
      %p228 = por %p226, %p227
      %p229 = scmp.ne.s32.totalorder %s218, %s219
      %p230 = scmp.eq.s32.totalorder %s28, 0
      %p231 = por %p229, %p230
      %p232 = scmp.ne.s32.totalorder %s218, %s219
      %p233 = scmp.eq.s32.totalorder %s29, 7
      %p234 = por %p232, %p233
      %p236 = scmp.ne.s32.totalorder %s219, %s235
      %p237 = scmp.eq.s32.totalorder %s29, 0
      %p238 = por %p236, %p237
      %p239 = scmp.le.s32.totalorder 1, %s23
      %p240 = scmp.lt.s32.totalorder %s23, 9
      %p241 = pnand %p239, %p240
      %p242 = pneg %p241
      // Predicated region
      $region9: #{tpu_custom_call.1} parent=5 // pred_check
        _
      $region10: #{tpu_custom_call.1} parent=5 // pred_check_branch
        %244 = sbr.rel (%p241) target = $region12
      $region11: #{tpu_custom_call.1} parent=5 // pred_region
        %s245 = ssub.s32 %s23, 1
        // Predicated region
        $region13: #{tpu_custom_call.1} parent=11 // pred_check
          %p246 = pneg %p119
        $region14: #{tpu_custom_call.1} parent=11 // pred_check_branch
          %248 = sbr.rel (%p246) target = $region16
        $region15: #{tpu_custom_call.1} parent=11 // pred_region
          _
        $region16: #{tpu_custom_call.1} parent=11 // pred_fallthru
          _
        // Predicated region
        $region17: #{tpu_custom_call.1} parent=11 // pred_check
          %p249 = pneg %p140
        $region18: #{tpu_custom_call.1} parent=11 // pred_check_branch
          %251 = sbr.rel (%p249) target = $region20
        $region19: #{tpu_custom_call.1} parent=11 // pred_region
          _
        $region20: #{tpu_custom_call.1} parent=11 // pred_fallthru
          _
        // Predicated region
        $region21: #{tpu_custom_call.1} parent=11 // pred_check
          %p252 = pneg %p161
        $region22: #{tpu_custom_call.1} parent=11 // pred_check_branch
          %254 = sbr.rel (%p252) target = $region24
        $region23: #{tpu_custom_call.1} parent=11 // pred_region
          _
        $region24: #{tpu_custom_call.1} parent=11 // pred_fallthru
          _
        // Predicated region
        $region25: #{tpu_custom_call.1} parent=11 // pred_check
          %p255 = pneg %p182
        $region26: #{tpu_custom_call.1} parent=11 // pred_check_branch
          %257 = sbr.rel (%p255) target = $region28
        $region27: #{tpu_custom_call.1} parent=11 // pred_region
          _
        $region28: #{tpu_custom_call.1} parent=11 // pred_fallthru
          _
        // Predicated region
        $region29: #{tpu_custom_call.1} parent=11 // pred_check
          %p258 = pneg %p203
        $region30: #{tpu_custom_call.1} parent=11 // pred_check_branch
          %260 = sbr.rel (%p258) target = $region32
        $region31: #{tpu_custom_call.1} parent=11 // pred_region
          _
        $region32: #{tpu_custom_call.1} parent=11 // pred_fallthru
          _
      $region12: #{tpu_custom_call.1} parent=5 // pred_fallthru
        _
      %p261 = scmp.lt.s32.totalorder %s23, 8
      // Predicated region
      $region33: #{tpu_custom_call.1} parent=5 // pred_check
        %p262 = pneg %p261
      $region34: #{tpu_custom_call.1} parent=5 // pred_check_branch
        %264 = sbr.rel (%p262) target = $region36
      $region35: #{tpu_custom_call.1} parent=5 // pred_region
        // Predicated region
        $region37: #{tpu_custom_call.1} parent=35 // pred_check
          %p265 = pneg %p64
        $region38: #{tpu_custom_call.1} parent=35 // pred_check_branch
          %267 = sbr.rel (%p265) target = $region40
        $region39: #{tpu_custom_call.1} parent=35 // pred_region
          %s268 = sand.u32 %s54, 1
          %s269 = scalar_lea.sflag [#allocation8], %s268
          %s270 = sand.u32 %s54, 1
          %s271 = smul.addr %s270, 16
          %s272 = scalar_lea.vmem [#allocation7], %s271
          %274 = vsyncadd %s269, 0
          %s275 = smul.addr %s30, 4
          %s276 = sadd.s32 %s31, %s275
          %s277 = smul.addr %s276, 8
          %s278 = scalar_lea.hbm %s0, %s277
          %s279 = sshll.u32 %s278, 4
          %s280 = int_to_ptr.hbm [resolvable:$true] %s279
          %s281 = sshll.u32 %s272, 4
          %s282 = int_to_ptr.vmem [resolvable:$true] %s281
          %287 = dma.hbm_to_vmem [thread:$0]  %s280, 256, %s282, %s269, 256, 128, 8
        $region40: #{tpu_custom_call.1} parent=35 // pred_fallthru
          _
        // Predicated region
        $region41: #{tpu_custom_call.1} parent=35 // pred_check
          %p288 = pneg %p92
        $region42: #{tpu_custom_call.1} parent=35 // pred_check_branch
          %290 = sbr.rel (%p288) target = $region44
        $region43: #{tpu_custom_call.1} parent=35 // pred_region
          %s291 = sand.u32 %s82, 1
          %s292 = scalar_lea.sflag [#allocation11], %s291
          %s293 = sand.u32 %s82, 1
          %s294 = smul.addr %s293, 16
          %s295 = scalar_lea.vmem [#allocation10], %s294
          %297 = vsyncadd %s292, 0
          %s298 = smul.addr %s30, 4
          %s299 = sadd.s32 %s32, %s298
          %s300 = smul.addr %s299, 8
          %s301 = scalar_lea.hbm %s1, %s300
          %s302 = sshll.u32 %s301, 4
          %s303 = int_to_ptr.hbm [resolvable:$true] %s302
          %s304 = sshll.u32 %s295, 4
          %s305 = int_to_ptr.vmem [resolvable:$true] %s304
          %310 = dma.hbm_to_vmem [thread:$0]  %s303, 256, %s305, %s292, 256, 128, 8
        $region44: #{tpu_custom_call.1} parent=35 // pred_fallthru
          _
      $region36: #{tpu_custom_call.1} parent=5 // pred_fallthru
        _
      %p311 = scmp.le.s32.totalorder 1, %s23
      %p312 = scmp.lt.s32.totalorder %s23, 9
      %p313 = pnand %p311, %p312
      %p314 = pneg %p313
      // Predicated region
      $region45: #{tpu_custom_call.1} parent=5 // pred_check
        _
      $region46: #{tpu_custom_call.1} parent=5 // pred_check_branch
        %316 = sbr.rel (%p313) target = $region48
      $region47: #{tpu_custom_call.1} parent=5 // pred_region
        %s317 = ssub.s32 %s23, 1
        %s318 = sand.u32 %s57, 1
        %s319 = scalar_lea.sflag [#allocation8], %s318
        %s320 = sand.u32 %s57, 1
        %s321 = smul.addr %s320, 16
        %s322 = scalar_lea.vmem [#allocation7], %s321
        // Predicated region
        $region49: #{tpu_custom_call.1} parent=47 // pred_check
          %p323 = pneg %p70
        $region50: #{tpu_custom_call.1} parent=47 // pred_check_branch
          %325 = sbr.rel (%p323) target = $region52
        $region51: #{tpu_custom_call.1} parent=47 // pred_region
          %327 = dma.done %s319, 256
        $region52: #{tpu_custom_call.1} parent=47 // pred_fallthru
          _
        %s328 = sand.u32 %s85, 1
        %s329 = scalar_lea.sflag [#allocation11], %s328
        %s330 = sand.u32 %s85, 1
        %s331 = smul.addr %s330, 16
        %s332 = scalar_lea.vmem [#allocation10], %s331
        // Predicated region
        $region53: #{tpu_custom_call.1} parent=47 // pred_check
          %p333 = pneg %p98
        $region54: #{tpu_custom_call.1} parent=47 // pred_check_branch
          %335 = sbr.rel (%p333) target = $region56
        $region55: #{tpu_custom_call.1} parent=47 // pred_region
          %337 = dma.done %s329, 256
        $region56: #{tpu_custom_call.1} parent=47 // pred_fallthru
          _
        %s338 = sand.u32 %s57, 1
        %s339 = scalar_lea.sflag [#allocation8], %s338
        %s340 = sand.u32 %s57, 1
        %s341 = smul.addr %s340, 16
        %s342 = scalar_lea.vmem [#allocation7], %s341
        %p343 = pneg %p70
        %p344 = pneg %p67
        %s345 = sand.u32 %s85, 1
        %s346 = scalar_lea.sflag [#allocation11], %s345
        %s347 = sand.u32 %s85, 1
        %s348 = smul.addr %s347, 16
        %s349 = scalar_lea.vmem [#allocation10], %s348
        %p350 = pneg %p98
        %p351 = pneg %p95
        %p352 = pneg %p119
        %p353 = pneg %p116
        %p354 = pneg %p140
        %p355 = pneg %p137
        %p356 = pneg %p161
        %p357 = pneg %p158
        %p358 = pneg %p182
        %p359 = pneg %p179
        %p360 = pneg %p203
        %p361 = pneg %p200
        %p362 = pneg %p231
        %p363 = pneg %p228
        %s364 = sand.u32 %s218, 1
        %s365 = scalar_lea.sflag [#allocation9], %s364
        %s366 = sand.u32 %s218, 1
        %s367 = smul.addr %s366, 16
        %s368 = scalar_lea.vmem [#allocation12], %s367
        %p369 = scmp.eq.s32.totalorder %s35, 0
        // Predicated region
        $region57: #{tpu_custom_call.1} parent=47 // pred_check
          %p370 = pneg %p369
        $region58: #{tpu_custom_call.1} parent=47 // pred_check_branch
          %372 = sbr.rel (%p370) target = $region60
        $region59: #{tpu_custom_call.1} parent=47 // pred_region
          %373 = vst [vmem:[#allocation3] sm:$0x1] -inf
          %374 = vst [vmem:[#allocation4] sm:$0x1] 0.0
          %375 = vst [vmem:[#allocation5] sm:$0xff] 0.0
          %376 = vst [vmem:[#allocation5 + $0x8] sm:$0xff] 0.0
          %v377 = vld [vmem:[%s322] sm:$0xff]
          %v378 = vld [vmem:[%s322 + $0x8] sm:$0xff]
          %v379 = vld [vmem:[%s2] sm:$0xff]
          %v380 = vld [vmem:[%s2 + $0x8] sm:$0xff]
          %v381 = vld [vmem:[%s3] sm:$0xff]
          %v382 = vld [vmem:[%s3 + $0x8] sm:$0xff]
          %384 = vset.pattern.permute.xlu0 0
          %385 = vperm.xlu0 %384, %v381
          %v386 = vpop.permute.xlu0 %385
          %389 = vset.pattern.permute.xlu0 0
          %390 = vperm.xlu0 %389, %v382
          %v391 = vpop.permute.xlu0 %390
          %vm393 = vcmask 130048
          %v395 = vsel %vm393, %v379, 0
          %v398 = vsel %vm393, %v380, 0
          %400 = vmatpush.msra.mxu0 0.0
          %401 = vmatpush.msra.mxu0 0.0
          %402 = vmatpush.msra.mxu0 0.0
          %403 = vmatpush.msra.mxu0 0.0
          %404 = vmatpush.msra.mxu0 0.0
          %405 = vmatpush.msra.mxu0 0.0
          %406 = vmatpush.msra.mxu0 0.0
          %407 = vmatpush.msra.mxu0 0.0
          %408 = vmatpush.msra.mxu0 0.0
          %409 = vmatpush.msra.mxu0 0.0
          %410 = vmatpush.msra.mxu0 0.0
          %411 = vmatpush.msra.mxu0 0.0
          %412 = vmatpush.msra.mxu0 0.0
          %413 = vmatpush.msra.mxu0 0.0
          %414 = vmatpush.msra.mxu0 %v378
          %415 = vmatpush.msra.mxu0 %v377
          %416 = vmatmul.f32.gmra.mxu0 %v395
          %v417 = vpop.f32.mrf.mxu0
          %v418 = vadd.f32 %v386, %v417
          %419 = vmatmul.f32.gmra.mxu0 %v398
          %v420 = vpop.f32.mrf.mxu0
          %v421 = vadd.f32 %v391, %v420
          %422 = vdwg.mxu0
          %423 = vst [vmem:[#allocation2] sm:$0xff] %v418
          %424 = vst [vmem:[#allocation2 + $0x8] sm:$0xff] %v421
        $region60: #{tpu_custom_call.1} parent=47 // pred_fallthru
          _
        %v425 = vld [vmem:[%s332] sm:$0xff]
        %v426 = vld [vmem:[%s332 + $0x8] sm:$0xff]
        %v427 = vld [vmem:[#allocation2] sm:$0xff]
        %v428 = vld [vmem:[#allocation2 + $0x8] sm:$0xff]
        %429 = vxpose.xlu0.b32.start [1/16] %v425, 128
        %430 = vxpose.xlu0.b32.cont [2/16] %v426, 128
        %431 = vxpose.xlu0.b32.cont [3/16] 0.0, 128
        %432 = vxpose.xlu0.b32.cont [4/16] 0.0, 128
        %433 = vxpose.xlu0.b32.cont [5/16] 0.0, 128
        %434 = vxpose.xlu0.b32.cont [6/16] 0.0, 128
        %435 = vxpose.xlu0.b32.cont [7/16] 0.0, 128
        %436 = vxpose.xlu0.b32.cont [8/16] 0.0, 128
        %437 = vxpose.xlu0.b32.cont [9/16] 0.0, 128
        %438 = vxpose.xlu0.b32.cont [10/16] 0.0, 128
        %439 = vxpose.xlu0.b32.cont [11/16] 0.0, 128
        %440 = vxpose.xlu0.b32.cont [12/16] 0.0, 128
        %441 = vxpose.xlu0.b32.cont [13/16] 0.0, 128
        %442 = vxpose.xlu0.b32.cont [14/16] 0.0, 128
        %443 = vxpose.xlu0.b32.cont [15/16] 0.0, 128
        %444 = vxpose.xlu0.b32.end [16/16] 0.0, 128
        %v445 = vpop.trf.xlu0
        %v446 = vpop.trf.xlu0
        %v447 = vpop.trf.xlu0
        %v448 = vpop.trf.xlu0
        %v449 = vpop.trf.xlu0
        %v450 = vpop.trf.xlu0
        %v451 = vpop.trf.xlu0
        %v452 = vpop.trf.xlu0
        %v453 = vpop.trf.xlu0
        %v454 = vpop.trf.xlu0
        %v455 = vpop.trf.xlu0
        %v456 = vpop.trf.xlu0
        %v457 = vpop.trf.xlu0
        %v458 = vpop.trf.xlu0
        %v459 = vpop.trf.xlu0
        %v460 = vpop.trf.xlu0
        %vm461 = vcmask 130048
        %v463 = vsel %vm461, %v445, 0
        %v466 = vsel %vm461, %v446, 0
        %v469 = vsel %vm461, %v447, 0
        %v472 = vsel %vm461, %v448, 0
        %v475 = vsel %vm461, %v449, 0
        %v478 = vsel %vm461, %v450, 0
        %v481 = vsel %vm461, %v451, 0
        %v484 = vsel %vm461, %v452, 0
        %v487 = vsel %vm461, %v453, 0
        %v490 = vsel %vm461, %v454, 0
        %v493 = vsel %vm461, %v455, 0
        %v496 = vsel %vm461, %v456, 0
        %v499 = vsel %vm461, %v457, 0
        %v502 = vsel %vm461, %v458, 0
        %v505 = vsel %vm461, %v459, 0
        %v508 = vsel %vm461, %v460, 0
        %510 = vmatpush.msra.mxu0 0.0
        %511 = vmatpush.msra.mxu0 0.0
        %512 = vmatpush.msra.mxu0 0.0
        %513 = vmatpush.msra.mxu0 0.0
        %514 = vmatpush.msra.mxu0 0.0
        %515 = vmatpush.msra.mxu0 0.0
        %516 = vmatpush.msra.mxu0 0.0
        %517 = vmatpush.msra.mxu0 0.0
        %518 = vmatpush.msra.mxu0 0.0
        %519 = vmatpush.msra.mxu0 0.0
        %520 = vmatpush.msra.mxu0 0.0
        %521 = vmatpush.msra.mxu0 0.0
        %522 = vmatpush.msra.mxu0 0.0
        %523 = vmatpush.msra.mxu0 0.0
        %524 = vmatpush.msra.mxu0 %v428
        %525 = vmatpush.msra.mxu0 %v427
        %526 = vmatmul.f32.gmra.mxu0 %v463
        %v527 = vpop.f32.mrf.mxu0
        %v528 = vadd.f32 0.0, %v527
        %529 = vmatmul.f32.gmra.mxu0 %v466
        %v530 = vpop.f32.mrf.mxu0
        %v531 = vadd.f32 0.0, %v530
        %532 = vmatmul.f32.gmra.mxu0 %v469
        %v533 = vpop.f32.mrf.mxu0
        %v534 = vadd.f32 0.0, %v533
        %535 = vmatmul.f32.gmra.mxu0 %v472
        %v536 = vpop.f32.mrf.mxu0
        %v537 = vadd.f32 0.0, %v536
        %538 = vmatmul.f32.gmra.mxu0 %v475
        %v539 = vpop.f32.mrf.mxu0
        %v540 = vadd.f32 0.0, %v539
        %541 = vmatmul.f32.gmra.mxu0 %v478
        %v542 = vpop.f32.mrf.mxu0
        %v543 = vadd.f32 0.0, %v542
        %544 = vmatmul.f32.gmra.mxu0 %v481
        %v545 = vpop.f32.mrf.mxu0
        %v546 = vadd.f32 0.0, %v545
        %547 = vmatmul.f32.gmra.mxu0 %v484
        %v548 = vpop.f32.mrf.mxu0
        %v549 = vadd.f32 0.0, %v548
        %550 = vmatmul.f32.gmra.mxu0 %v487
        %v551 = vpop.f32.mrf.mxu0
        %v552 = vadd.f32 0.0, %v551
        %553 = vmatmul.f32.gmra.mxu0 %v490
        %v554 = vpop.f32.mrf.mxu0
        %v555 = vadd.f32 0.0, %v554
        %556 = vmatmul.f32.gmra.mxu0 %v493
        %v557 = vpop.f32.mrf.mxu0
        %v558 = vadd.f32 0.0, %v557
        %559 = vmatmul.f32.gmra.mxu0 %v496
        %v560 = vpop.f32.mrf.mxu0
        %v561 = vadd.f32 0.0, %v560
        %562 = vmatmul.f32.gmra.mxu0 %v499
        %v563 = vpop.f32.mrf.mxu0
        %v564 = vadd.f32 0.0, %v563
        %565 = vmatmul.f32.gmra.mxu0 %v502
        %v566 = vpop.f32.mrf.mxu0
        %v567 = vadd.f32 0.0, %v566
        %568 = vmatmul.f32.gmra.mxu0 %v505
        %v569 = vpop.f32.mrf.mxu0
        %v570 = vadd.f32 0.0, %v569
        %571 = vmatmul.f32.gmra.mxu0 %v508
        %v572 = vpop.f32.mrf.mxu0
        %v573 = vadd.f32 0.0, %v572
        %574 = vdwg.mxu0
        %v575 = vld [vmem:[#allocation3] sm:$0x1]
        %v576 = vmax.f32 %v528, %v540
        %v577 = vmax.f32 %v531, %v543
        %v578 = vmax.f32 %v534, %v546
        %v579 = vmax.f32 %v537, %v549
        %v580 = vmax.f32 %v576, %v552
        %v581 = vmax.f32 %v577, %v555
        %v582 = vmax.f32 %v578, %v558
        %v583 = vmax.f32 %v579, %v561
        %v584 = vmax.f32 %v580, %v564
        %v585 = vmax.f32 %v581, %v567
        %v586 = vmax.f32 %v582, %v570
        %v587 = vmax.f32 %v583, %v573
        %v588 = vmax.f32 %v584, %v585
        %v589 = vmax.f32 %v586, %v587
        %v590 = vmax.f32 %v588, %v589
        %v591 = vrot.slane %v590, 4
        %v592 = vmax.f32 %v590, %v591
        %v593 = vrot.slane %v592, 2
        %v594 = vmax.f32 %v592, %v593
        %v595 = vrot.slane %v594, 1
        %v596 = vmax.f32 %v594, %v595
        %v597 = vmax.f32 %v575, %v596
        %v598 = vsub.f32 %v575, %v597
        %v599 = vmul.f32 %v598, 1.442695
        %v600 = vpow.pop %v599
        %v602 = vperm.slane %v597, 0
        %v604 = vsub.f32 %v528, %v602
        %v605 = vsub.f32 %v531, %v602
        %v606 = vsub.f32 %v534, %v602
        %v607 = vsub.f32 %v537, %v602
        %v608 = vsub.f32 %v540, %v602
        %v609 = vsub.f32 %v543, %v602
        %v610 = vsub.f32 %v546, %v602
        %v611 = vsub.f32 %v549, %v602
        %v612 = vsub.f32 %v552, %v602
        %v613 = vsub.f32 %v555, %v602
        %v614 = vsub.f32 %v558, %v602
        %v615 = vsub.f32 %v561, %v602
        %v616 = vsub.f32 %v564, %v602
        %v617 = vsub.f32 %v567, %v602
        %v618 = vsub.f32 %v570, %v602
        %v619 = vsub.f32 %v573, %v602
        %v620 = vmul.f32 %v604, 1.442695
        %v621 = vpow.pop %v620
        %v622 = vmul.f32 %v605, 1.442695
        %v623 = vpow.pop %v622
        %v624 = vmul.f32 %v606, 1.442695
        %v625 = vpow.pop %v624
        %v626 = vmul.f32 %v607, 1.442695
        %v627 = vpow.pop %v626
        %v628 = vmul.f32 %v608, 1.442695
        %v629 = vpow.pop %v628
        %v630 = vmul.f32 %v609, 1.442695
        %v631 = vpow.pop %v630
        %v632 = vmul.f32 %v610, 1.442695
        %v633 = vpow.pop %v632
        %v634 = vmul.f32 %v611, 1.442695
        %v635 = vpow.pop %v634
        %v636 = vmul.f32 %v612, 1.442695
        %v637 = vpow.pop %v636
        %v638 = vmul.f32 %v613, 1.442695
        %v639 = vpow.pop %v638
        %v640 = vmul.f32 %v614, 1.442695
        %v641 = vpow.pop %v640
        %v642 = vmul.f32 %v615, 1.442695
        %v643 = vpow.pop %v642
        %v644 = vmul.f32 %v616, 1.442695
        %v645 = vpow.pop %v644
        %v646 = vmul.f32 %v617, 1.442695
        %v647 = vpow.pop %v646
        %v648 = vmul.f32 %v618, 1.442695
        %v649 = vpow.pop %v648
        %v650 = vmul.f32 %v619, 1.442695
        %v651 = vpow.pop %v650
        %v652 = vld [vmem:[#allocation4] sm:$0x1]
        %v653 = vmul.f32 %v600, %v652
        %v654 = vadd.f32 %v621, %v623
        %v655 = vadd.f32 %v654, %v625
        %v656 = vadd.f32 %v655, %v627
        %v657 = vadd.f32 %v656, %v629
        %v658 = vadd.f32 %v657, %v631
        %v659 = vadd.f32 %v658, %v633
        %v660 = vadd.f32 %v659, %v635
        %v661 = vadd.f32 %v660, %v637
        %v662 = vadd.f32 %v661, %v639
        %v663 = vadd.f32 %v662, %v641
        %v664 = vadd.f32 %v663, %v643
        %v665 = vadd.f32 %v664, %v645
        %v666 = vadd.f32 %v665, %v647
        %v667 = vadd.f32 %v666, %v649
        %v668 = vadd.f32 %v667, %v651
        %v669 = vrot.slane %v668, 4
        %v670 = vadd.f32 %v668, %v669
        %v671 = vrot.slane %v670, 2
        %v672 = vadd.f32 %v670, %v671
        %v673 = vrot.slane %v672, 1
        %v674 = vadd.f32 %v672, %v673
        %v675 = vadd.f32 %v653, %v674
        %676 = vst [vmem:[#allocation4] sm:$0x1] %v675
        %v677 = vld [vmem:[#allocation5] sm:$0xff]
        %v678 = vld [vmem:[#allocation5 + $0x8] sm:$0xff]
        %v680 = vperm.slane %v600, 0
        %v682 = vmul.f32 %v680, %v677
        %v683 = vmul.f32 %v680, %v678
        %684 = vmatpush.msra.mxu0 %v651
        %685 = vmatpush.msra.mxu0 %v649
        %686 = vmatpush.msra.mxu0 %v647
        %687 = vmatpush.msra.mxu0 %v645
        %688 = vmatpush.msra.mxu0 %v643
        %689 = vmatpush.msra.mxu0 %v641
        %690 = vmatpush.msra.mxu0 %v639
        %691 = vmatpush.msra.mxu0 %v637
        %692 = vmatpush.msra.mxu0 %v635
        %693 = vmatpush.msra.mxu0 %v633
        %694 = vmatpush.msra.mxu0 %v631
        %695 = vmatpush.msra.mxu0 %v629
        %696 = vmatpush.msra.mxu0 %v627
        %697 = vmatpush.msra.mxu0 %v625
        %698 = vmatpush.msra.mxu0 %v623
        %699 = vmatpush.msra.mxu0 %v621
        %700 = vmatmul.f32.gmra.mxu0 %v425
        %v701 = vpop.f32.mrf.mxu0
        %v702 = vadd.f32 0.0, %v701
        %703 = vmatmul.f32.gmra.mxu0 %v426
        %v704 = vpop.f32.mrf.mxu0
        %v705 = vadd.f32 0.0, %v704
        %706 = vdwg.mxu0
        %v707 = vadd.f32 %v682, %v702
        %v708 = vadd.f32 %v683, %v705
        %709 = vst [vmem:[#allocation5] sm:$0xff] %v707
        %710 = vst [vmem:[#allocation5 + $0x8] sm:$0xff] %v708
        %711 = vst [vmem:[#allocation3] sm:$0x1] %v597
        %p712 = scmp.eq.s32.totalorder %s35, 1
        // Predicated region
        $region61: #{tpu_custom_call.1} parent=47 // pred_check
          %p713 = pneg %p712
        $region62: #{tpu_custom_call.1} parent=47 // pred_check_branch
          %715 = sbr.rel (%p713) target = $region64
        $region63: #{tpu_custom_call.1} parent=47 // pred_region
          %v716 = vld [vmem:[#allocation4] sm:$0x1]
          %v717 = vrcp.pop %v716
          %v718 = vmul.f32 %v716, %v717
          %v719 = vsub.f32 1.0, %v718
          %v720 = vmul.f32 %v717, %v719
          %v721 = vadd.f32 %v717, %v720
          %vm722 = vweird.f32 %v716
          %vm723 = vweird.f32 %v717
          %vm724 = vmor %vm722, %vm723
          %v725 = vsel %vm724, %v717, %v721
          %v726 = vand.u32 2147483647, %v716
          %vm727 = vcmp.eq.f32.partialorder %v726, 8.507059e+37
          %v728 = vand.u32 %v716, 2147483648
          %v729 = vor.u32 1.1754944e-38, %v728
          %v730 = vsel %vm727, %v729, %v725
          %v731 = vld [vmem:[#allocation5] sm:$0xff]
          %v732 = vld [vmem:[#allocation5 + $0x8] sm:$0xff]
          %v734 = vperm.slane %v730, 0
          %v736 = vmul.f32 %v731, %v734
          %v737 = vmul.f32 %v732, %v734
          %v738 = vld [vmem:[%s4] sm:$0xff]
          %v739 = vld [vmem:[%s4 + $0x8] sm:$0xff]
          %v740 = vld [vmem:[%s5] sm:$0xff]
          %v741 = vld [vmem:[%s5 + $0x8] sm:$0xff]
          %743 = vset.pattern.permute.xlu0 0
          %744 = vperm.xlu0 %743, %v740
          %v745 = vpop.permute.xlu0 %744
          %748 = vset.pattern.permute.xlu0 0
          %749 = vperm.xlu0 %748, %v741
          %v750 = vpop.permute.xlu0 %749
          %v753 = vsel %vm461, %v738, 0
          %v756 = vsel %vm461, %v739, 0
          %758 = vmatpush.msra.mxu0 0.0
          %759 = vmatpush.msra.mxu0 0.0
          %760 = vmatpush.msra.mxu0 0.0
          %761 = vmatpush.msra.mxu0 0.0
          %762 = vmatpush.msra.mxu0 0.0
          %763 = vmatpush.msra.mxu0 0.0
          %764 = vmatpush.msra.mxu0 0.0
          %765 = vmatpush.msra.mxu0 0.0
          %766 = vmatpush.msra.mxu0 0.0
          %767 = vmatpush.msra.mxu0 0.0
          %768 = vmatpush.msra.mxu0 0.0
          %769 = vmatpush.msra.mxu0 0.0
          %770 = vmatpush.msra.mxu0 0.0
          %771 = vmatpush.msra.mxu0 0.0
          %772 = vmatpush.msra.mxu0 %v737
          %773 = vmatpush.msra.mxu0 %v736
          %774 = vmatmul.f32.gmra.mxu0 %v753
          %v775 = vpop.f32.mrf.mxu0
          %v776 = vadd.f32 %v745, %v775
          %777 = vmatmul.f32.gmra.mxu0 %v756
          %v778 = vpop.f32.mrf.mxu0
          %v779 = vadd.f32 %v750, %v778
          %780 = vdwg.mxu0
          %s781 = sld [smem:[#allocation6]]
          %v782 = vstv %s781
          %v783 = vmul.f32 %v782, %v776
          %v784 = vmul.f32 %v782, %v779
          %v785 = vld [vmem:[%s322] sm:$0xff]
          %v786 = vld [vmem:[%s322 + $0x8] sm:$0xff]
          %v787 = vadd.f32 %v783, %v785
          %v788 = vadd.f32 %v784, %v786
          %789 = vst [vmem:[%s368] sm:$0xff] %v787
          %790 = vst [vmem:[%s368 + $0x8] sm:$0xff] %v788
        $region64: #{tpu_custom_call.1} parent=47 // pred_fallthru
          _
        %s791 = sand.u32 %s218, 1
        %s792 = scalar_lea.sflag [#allocation9], %s791
        %s793 = sand.u32 %s218, 1
        %s794 = smul.addr %s793, 16
        %s795 = scalar_lea.vmem [#allocation12], %s794
        // Predicated region
        $region65: #{tpu_custom_call.1} parent=47 // pred_check
          %p796 = pneg %p228
        $region66: #{tpu_custom_call.1} parent=47 // pred_check_branch
          %798 = sbr.rel (%p796) target = $region68
        $region67: #{tpu_custom_call.1} parent=47 // pred_region
          %800 = vsyncadd %s792, 0
          %s801 = smul.addr %s33, 4
          %s802 = sadd.s32 %s34, %s801
          %s803 = smul.addr %s802, 8
          %s804 = scalar_lea.hbm %s7, %s803
          %s805 = sshll.u32 %s795, 4
          %s806 = int_to_ptr.vmem [resolvable:$true] %s805
          %s807 = sshll.u32 %s804, 4
          %s808 = int_to_ptr.hbm [resolvable:$true] %s807
          %813 = dma.vmem_to_hbm [thread:$0]  %s806, 256, %s808, %s792, 128, 256, 8
        $region68: #{tpu_custom_call.1} parent=47 // pred_fallthru
          _
      $region48: #{tpu_custom_call.1} parent=5 // pred_fallthru
        _
      %p814 = scmp.le.s32.totalorder 2, %s23
      // Predicated region
      $region69: #{tpu_custom_call.1} parent=5 // pred_check
        %p815 = pneg %p814
      $region70: #{tpu_custom_call.1} parent=5 // pred_check_branch
        %817 = sbr.rel (%p815) target = $region72
      $region71: #{tpu_custom_call.1} parent=5 // pred_region
        %s818 = ssub.s32 %s23, 2
        // Predicated region
        $region73: #{tpu_custom_call.1} parent=71 // pred_check
          %p819 = pneg %p234
        $region74: #{tpu_custom_call.1} parent=71 // pred_check_branch
          %821 = sbr.rel (%p819) target = $region76
        $region75: #{tpu_custom_call.1} parent=71 // pred_region
          %s822 = sand.u32 %s219, 1
          %s823 = scalar_lea.sflag [#allocation9], %s822
          %s824 = sand.u32 %s219, 1
          %s825 = smul.addr %s824, 16
          %s826 = scalar_lea.vmem [#allocation12], %s825
          %828 = dma.done %s823, 256
        $region76: #{tpu_custom_call.1} parent=71 // pred_fallthru
          _
      $region72: #{tpu_custom_call.1} parent=5 // pred_fallthru
        _
    $region6: #{tpu_custom_call.1} parent=1 // loop_footer
      %s27 = sadd.s32 1, %s23
    $region7: #{tpu_custom_call.1} parent=1 // loop_footer_branch
      %22 = sbr.rel target = $region3
    $region8: #{tpu_custom_call.1} parent=1 // loop_exit
      _
    %829 = vsyncpa [#allocation8], 1
    %s830 = scalar_lea.sflag [#allocation8], 1
    %831 = vsyncpa %s830, 1
    %832 = vsyncpa [#allocation11], 1
    %s833 = scalar_lea.sflag [#allocation11], 1
    %834 = vsyncpa %s833, 1
    %835 = vsyncpa [#allocation9], 1
    %s836 = scalar_lea.sflag [#allocation9], 1
    %837 = vsyncpa %s836, 1

</llo_original>
